<compile_context>
chip_gen: v5e
topology: v5e:2x2
jax: 0.10.0
libtpu: 0.0.40
codegen_flags: <defaults>
</compile_context>

<pallas_src>
import math
from functools import partial

import jax
import jax.numpy as jnp
from jax import lax
from jax.experimental import pallas as pl
from jax.experimental.pallas import tpu as pltpu


# --------------------------------------------------------------- ALiBi slopes
def _alibi_slopes(n_heads):
    """Static python re-implementation of the module's _get_alibi_slopes."""
    def pow2(n):
        start = 2 ** (-2 ** (-(math.log2(n) - 3)))
        return [start * (start ** i) for i in range(n)]

    if n_heads <= 0:
        return []
    if n_heads & (n_heads - 1) == 0:
        return pow2(n_heads)
    closest = 2 ** math.floor(math.log2(n_heads))
    slopes = pow2(closest)
    extra_base = 2 ** (-2 ** (-(math.log2(2 * closest) - 3)))
    slopes.extend([extra_base * (extra_base ** i) for i in range(n_heads - closest)])
    return slopes[:n_heads]


# -------------------------------------------------------------- small helpers
def _round_up(x, m):
    return ((x + m - 1) // m) * m


def _sublane_multiple(dtype):
    itemsize = jnp.dtype(dtype).itemsize
    return 8 * max(1, 4 // itemsize)          # 8 for f32, 16 for bf16, 32 for int8


def _pick_tile(dim, preferred, multiple):
    """Largest tile <= preferred that divides dim and is a multiple of `multiple`."""
    if dim <= preferred:
        return dim
    for cand in range(preferred, multiple - 1, -1):
        if cand % multiple == 0 and dim % cand == 0:
            return cand
    # TODO(synk): odd sequence lengths fall back to a whole-dim tile; the proper
    # fix is a cdiv grid plus in-kernel masking of the ragged tail.
    return dim


def _padded_nbytes(shape, dtype):
    """Honest VMEM footprint of a block: last dim -> 128 lanes, 2nd-last -> sublanes."""
    itemsize = jnp.dtype(dtype).itemsize
    s = [int(d) for d in shape]
    if len(s) >= 1:
        s[-1] = _round_up(s[-1], 128)
    if len(s) >= 2:
        s[-2] = _round_up(s[-2], _sublane_multiple(dtype))
    n = 1
    for d in s:
        n *= d
    return n * itemsize


def _tpu_kind():
    try:
        return jax.devices()[0].device_kind.lower()
    except Exception:
        return ""


def _vmem_limit_or_none(need_bytes, is_v7x):
    need = int(need_bytes) + (2 << 20)        # pipeline / compiler headroom
    if need <= (14 << 20):                    # default scoped limit is plenty
        return None
    cap = (56 << 20) if is_v7x else (100 << 20)   # v7x: 64 MiB phys; v5e/v6e: 128 MiB
    return int(min(need, cap))


# ------------------------------------------------------ kernel 1: projection
def _qkv_proj_kernel(vt_ref, *refs, n_head, head_dim, n_embd, has_bias, use_v):
    # vt_ref: (H, H) f32 SMEM scalars (scalar prefetch), only used when use_v.
    # x_ref/xt_ref: (TM, C); w_ref: (C, 2C); b_ref: (1, 2C) f32.
    # q_ref/k_ref/v_ref: (H, TM, hd).
    if use_v:
        x_ref, xt_ref, w_ref, b_ref, q_ref, k_ref, v_ref = refs
    else:
        x_ref, w_ref, b_ref, q_ref, k_ref = refs
        xt_ref = v_ref = None
    H, hd, C = n_head, head_dim, n_embd

    x = x_ref[...]                                        # native dtype -> MXU
    b = b_ref[...]                                        # (1, 2C) f32

    def split_heads(flat):                                # (TM, C) -> (H, TM, hd)
        # One stacked value + ONE store per tensor (instead of H masked
        # sub-lane-width stores).
        # TODO(synk): for head_dim >= 128 a reshape+transpose (pltpu.einshape)
        # avoids the per-head slices entirely.
        return jnp.stack([flat[:, h * hd:(h + 1) * hd] for h in range(H)], axis=0)

    # Two separate dots keep the peak live f32 at (TM, C), not (TM, 2C).
    qf = jnp.dot(x, w_ref[:, 0:C], preferred_element_type=jnp.float32)
    if has_bias:
        qf = qf + b[:, 0:C]
    q_ref[...] = split_heads(qf).astype(q_ref.dtype)

    kf = jnp.dot(x, w_ref[:, C:2 * C], preferred_element_type=jnp.float32)
    if has_bias:
        kf = kf + b[:, C:2 * C]
    k_ref[...] = split_heads(kf).astype(k_ref.dtype)

    if use_v:
        # kron(v_tmp, I_hd) value lift == per-head mixing with (H, H) scalars
        # (factor head_dim fewer FLOPs than the dense (C, C) matmul).
        xt = xt_ref[...].astype(jnp.float32)
        heads = [xt[:, j * hd:(j + 1) * hd] for j in range(H)]
        mixed = []
        for i in range(H):
            acc = vt_ref[i, 0] * heads[0]
            for j in range(1, H):
                acc = acc + vt_ref[i, j] * heads[j]
            mixed.append(acc)
        v_ref[...] = jnp.stack(mixed, axis=0).astype(v_ref.dtype)


# ------------------------------------------------ kernel 2: flash attention
def _flash_attn_kernel(qi_tab_ref, ki_tab_ref, pm_ref, slopes_ref,
                       q_ref, k_ref, v_ref, o_ref,
                       m_sc, l_sc, acc_sc, *,
                       n_head, head_dim, tq, tk, use_proj, v_token_major):
    # qi_tab/ki_tab: (n_steps,) i32 SMEM    pm_ref: (H, H) f32 SMEM
    # slopes_ref: (H, 1, 1) f32 VMEM
    # q_ref/k_ref: (H, tq, hd)              v_ref: (H, tk, hd) or (tk, C)
    # o_ref: (tq, C)
    # scratch: m/l (H, tq) f32 lane-dense, acc (H, tq, hd) f32
    t = pl.program_id(1)
    qi = qi_tab_ref[t]
    ki = ki_tab_ref[t]
    H, hd = n_head, head_dim
    scale = 1.0 / math.sqrt(hd)

    @pl.when(ki == 0)
    def _init():
        m_sc[...] = jnp.full(m_sc.shape, -jnp.inf, m_sc.dtype)
        l_sc[...] = jnp.zeros(l_sc.shape, l_sc.dtype)
        acc_sc[...] = jnp.zeros(acc_sc.shape, acc_sc.dtype)

    q = q_ref[...]                                        # (H, tq, hd)
    k = k_ref[...]                                        # (H, tk, hd)
    if v_token_major:
        vtok = v_ref[...]                                 # (tk, C) lane-dense DMA
        v = jnp.stack([vtok[:, h * hd:(h + 1) * hd] for h in range(H)], axis=0)
    else:
        v = v_ref[...]                                    # (H, tk, hd)

    # Batched-over-heads QK^T on the MXU, f32 accumulation.
    s = jnp.einsum('hqd,hkd->hqk', q, k,
                   preferred_element_type=jnp.float32) * scale

    rows = lax.broadcasted_iota(jnp.int32, (tq, tk), 0)   # query offset in tile
    cols = lax.broadcasted_iota(jnp.int32, (tq, tk), 1)   # key offset in tile
    rel_i = (cols - rows) + (ki * tk - qi * tq)           # global key - query
    s = s + slopes_ref[...] * rel_i.astype(jnp.float32)[None, :, :]   # ALiBi bias

    def _accumulate(scores):
        m_prev = m_sc[...]                                # (H, tq) lane-dense
        m_new = jnp.maximum(m_prev, jnp.max(scores, axis=-1))
        alpha = jnp.exp(m_prev - m_new)
        p = jnp.exp(scores - m_new[:, :, None])
        l_sc[...] = alpha * l_sc[...] + jnp.sum(p, axis=-1)
        acc_sc[...] = alpha[:, :, None] * acc_sc[...] + jnp.einsum(
            'hqk,hkd->hqd', p.astype(v.dtype), v,
            preferred_element_type=jnp.float32)
        m_sc[...] = m_new

    # Interior blocks (ki < qi, guaranteed by the triangular grid) are fully
    # unmasked: no causal compare/select for the large majority of steps.
    @pl.when(ki < qi)
    def _interior():
        _accumulate(s)

    # Diagonal block: apply the causal mask; it is also the last block of the
    # q-tile run, so finalize here.
    @pl.when(ki == qi)
    def _diag_and_finalize():
        _accumulate(jnp.where((rel_i <= 0)[None, :, :], s, -jnp.inf))

        y = acc_sc[...] * (1.0 / l_sc[...])[:, :, None]   # exact normalization
        heads = [y[h] for h in range(H)]
        if use_proj:
            # kron(proj_tmp, I_hd) output lift == per-head scalar mixing.
            mixed = []
            for i in range(H):
                acc = pm_ref[i, 0] * heads[0]
                for j in range(1, H):
                    acc = acc + pm_ref[i, j] * heads[j]
                mixed.append(acc)
            heads = mixed
        # Single unmasked lane-dense (tq, C) store.
        # TODO(synk): attn_dropout / resid_dropout omitted (eval-mode identity).
        o_ref[...] = jnp.concatenate(heads, axis=-1).astype(o_ref.dtype)


# ------------------------------------------------------------------ wrapper
def factored_attention_alibi(x_norm_for_qk, xt_current_for_v, w_attn, b_attn,
                             v_tmp, proj_tmp, *, n_head,
                             use_v=False, use_proj=False,
                             tm_tile=None, tq_tile=None):
    """Forward pass of FactoredCausalSelfAttentionALiBi (eval mode).

    w_attn is the c_attn weight stored transposed as (C, 2C): projection is
    x @ w_attn (+ b).  tm_tile / tq_tile are optional test overrides.
    """
    B, T, C = x_norm_for_qk.shape
    assert C % n_head == 0
    hd = C // n_head
    dtype = x_norm_for_qk.dtype
    has_bias = b_attn is not None

    kind = _tpu_kind()
    is_v7x = "v7" in kind
    is_v5 = "v5" in kind
    sub_mult = _sublane_multiple(dtype)

    slopes = jnp.asarray(_alibi_slopes(n_head), jnp.float32).reshape(n_head, 1, 1)
    b2 = (b_attn.reshape(1, 2 * C) if has_bias
          else jnp.zeros((1, 2 * C), jnp.float32)).astype(jnp.float32)
    vt = (v_tmp if (use_v and v_tmp is not None)
          else jnp.zeros((n_head, n_head), jnp.float32)).astype(jnp.float32)
    pm = (proj_tmp if (use_proj and proj_tmp is not None)
          else jnp.zeros((n_head, n_head), jnp.float32)).astype(jnp.float32)

    # ---- kernel 1: fused Q/K projection (+ optional V lift, else bypassed) --
    if tm_tile is not None:
        TM = tm_tile
        assert T % TM == 0
    else:
        # v5e/v6e have 128 MiB physical VMEM -> bigger token tiles; v7x has 64.
        TM = _pick_tile(T, 256 if is_v7x else 512, sub_mult)

    x_blk = _padded_nbytes((TM, C), dtype)
    qk_blk = _padded_nbytes((n_head, TM, hd), dtype)
    streams = (2 * x_blk + 3 * qk_blk) if use_v else (x_blk + 2 * qk_blk)
    # TODO(synk): for weights approaching the VMEM budget (large C on v7x), tile
    # the 2C output dim with a third grid axis / pl.Buffered(1) on the w spec.
    proj_need = (2 * streams + 2 * _padded_nbytes((C, 2 * C), w_attn.dtype)
                 + 2 * _padded_nbytes((1, 2 * C), jnp.float32))
    cp1 = dict(dimension_semantics=("parallel", "parallel"))
    lim1 = _vmem_limit_or_none(proj_need, is_v7x)
    if lim1 is not None:
        cp1["vmem_limit_bytes"] = lim1

    head_shape = jax.ShapeDtypeStruct((B, n_head, T, hd), dtype)
    in_specs = [pl.BlockSpec((None, TM, C), lambda b, m, *_: (b, m, 0))]
    ins = [x_norm_for_qk]
    if use_v:
        in_specs.append(pl.BlockSpec((None, TM, C), lambda b, m, *_: (b, m, 0)))
        ins.append(xt_current_for_v)
    in_specs += [pl.BlockSpec((C, 2 * C), lambda b, m, *_: (0, 0)),
                 pl.BlockSpec((1, 2 * C), lambda b, m, *_: (0, 0))]
    ins += [w_attn, b2]
    head_spec = pl.BlockSpec((None, n_head, TM, hd), lambda b, m, *_: (b, 0, m, 0))
    n_out1 = 3 if use_v else 2

    proj_out = pl.pallas_call(
        partial(_qkv_proj_kernel, n_head=n_head, head_dim=hd, n_embd=C,
                has_bias=has_bias, use_v=use_v),
        out_shape=(head_shape,) * n_out1,
        grid_spec=pltpu.PrefetchScalarGridSpec(
            num_scalar_prefetch=1,
            grid=(B, T // TM),
            in_specs=in_specs,
            out_specs=(head_spec,) * n_out1),
        compiler_params=pltpu.CompilerParams(**cp1),
    )(vt, *ins)
    if use_v:
        q4, k4, v_src = proj_out
    else:
        q4, k4 = proj_out
        v_src = xt_current_for_v   # bypass: no V materialisation / HBM round-trip

    # ---- kernel 2: triangular-grid flash attention with ALiBi ---------------
    def _flash_need(tq):
        q_blk = _padded_nbytes((n_head, tq, hd), dtype)
        if use_v:
            v_blk = _padded_nbytes((n_head, tq, hd), dtype)
        else:
            v_blk = _padded_nbytes((tq, C), v_src.dtype)
        o_blk = _padded_nbytes((tq, C), dtype)
        scratch = (2 * _padded_nbytes((n_head, tq), jnp.float32)
                   + _padded_nbytes((n_head, tq, hd), jnp.float32))
        small = 2 * _padded_nbytes((n_head, 1, 1), jnp.float32)
        return 2 * (2 * q_blk + v_blk + o_blk) + scratch + small

    if tq_tile is not None:
        TQ = tq_tile
        assert T % TQ == 0
    else:
        # v5e MXU tiles are 128 wide; v6e/v7x have 256-wide MXUs.
        TQ = _pick_tile(T, 128 if is_v5 else 256, sub_mult)
        budget = (48 << 20) if is_v7x else (96 << 20)
        while TQ > sub_mult and _flash_need(TQ) > budget:
            smaller = _pick_tile(T, TQ // 2, sub_mult)
            if smaller >= TQ:
                break
            TQ = smaller

    nq = T // TQ
    # Enumerate only lower-triangular (qi, ki) blocks: masked K/V blocks are
    # never DMA'd and never cost a grid step (~2x fewer steps and K/V reads).
    qi_list, ki_list = [], []
    for q_i in range(nq):
        for k_i in range(q_i + 1):
            qi_list.append(q_i)
            ki_list.append(k_i)
    qi_tab = jnp.asarray(qi_list, jnp.int32)
    ki_tab = jnp.asarray(ki_list, jnp.int32)
    n_steps = len(qi_list)

    cp2 = dict(dimension_semantics=("parallel", "arbitrary"))
    lim2 = _vmem_limit_or_none(_flash_need(TQ), is_v7x)
    if lim2 is not None:
        cp2["vmem_limit_bytes"] = lim2

    if use_v:
        v_spec = pl.BlockSpec((None, n_head, TQ, hd),
                              lambda b, t, qt, kt, *_: (b, 0, kt[t], 0))
    else:
        v_spec = pl.BlockSpec((None, TQ, C),
                              lambda b, t, qt, kt, *_: (b, kt[t], 0))

    out = pl.pallas_call(
        partial(_flash_attn_kernel, n_head=n_head, head_dim=hd,
                tq=TQ, tk=TQ, use_proj=use_proj, v_token_major=not use_v),
        out_shape=jax.ShapeDtypeStruct((B, T, C), dtype),
        grid_spec=pltpu.PrefetchScalarGridSpec(
            num_scalar_prefetch=3,
            grid=(B, n_steps),
            in_specs=[
                pl.BlockSpec((n_head, 1, 1), lambda b, t, *_: (0, 0, 0)),
                pl.BlockSpec((None, n_head, TQ, hd),
                             lambda b, t, qt, kt, *_: (b, 0, qt[t], 0)),
                pl.BlockSpec((None, n_head, TQ, hd),
                             lambda b, t, qt, kt, *_: (b, 0, kt[t], 0)),
                v_spec,
            ],
            out_specs=pl.BlockSpec((None, TQ, C),
                                   lambda b, t, qt, kt, *_: (b, qt[t], 0)),
            scratch_shapes=[
                pltpu.VMEM((n_head, TQ), jnp.float32),      # running max (lane-dense)
                pltpu.VMEM((n_head, TQ), jnp.float32),      # running sum (lane-dense)
                pltpu.VMEM((n_head, TQ, hd), jnp.float32),  # output accumulator
            ]),
        compiler_params=pltpu.CompilerParams(**cp2),
    )(qi_tab, ki_tab, pm, slopes, q4, k4, v_src)
    return out


# --------------------------------------------------------- pure-JAX reference
def reference(x_qk, xt_v, w, b, v_tmp, proj_tmp, *, n_head, use_v, use_proj):
    B, T, C = x_qk.shape
    hd = C // n_head
    slopes = jnp.asarray(_alibi_slopes(n_head), jnp.float32)

    qk = jnp.einsum('btc,cd->btd', x_qk, w,
                    precision=lax.Precision.HIGHEST) + b[None, None, :]
    q = qk[..., :C].reshape(B, T, n_head, hd).transpose(0, 2, 1, 3)
    k = qk[..., C:].reshape(B, T, n_head, hd).transpose(0, 2, 1, 3)

    if use_v:
        vlift = jnp.kron(v_tmp, jnp.eye(hd, dtype=jnp.float32))
        xt = jnp.einsum('btc,dc->btd', xt_v, vlift, precision=lax.Precision.HIGHEST)
    else:
        xt = xt_v
    v = xt.reshape(B, T, n_head, hd).transpose(0, 2, 1, 3)

    scale = 1.0 / math.sqrt(hd)
    scores = jnp.einsum('bhqd,bhkd->bhqk', q, k,
                        precision=lax.Precision.HIGHEST) * scale
    if T > 1:
        pos = jnp.arange(T, dtype=jnp.float32)
        rel = pos[None, :] - pos[:, None]
        causal = jnp.tril(jnp.ones((T, T), bool))
        bias = slopes[:, None, None] * rel[None, :, :]
        bias = jnp.where(causal[None], bias, -jnp.inf)
        scores = scores + bias[None]
    p = jax.nn.softmax(scores, axis=-1)
    y = jnp.einsum('bhqk,bhkd->bhqd', p, v, precision=lax.Precision.HIGHEST)
    y = y.transpose(0, 2, 1, 3).reshape(B, T, C)
    if use_proj:
        plift = jnp.kron(proj_tmp, jnp.eye(hd, dtype=jnp.float32))
        y = jnp.einsum('btc,dc->btd', y, plift, precision=lax.Precision.HIGHEST)
    return y


# -------------------------------------------------------------------- main
if __name__ == "__main__":
    B, C, H = 2, 32, 4          # batch, n_embd, n_head

    def make_inputs(T):
        key = jax.random.PRNGKey(0)
        k1, k2, k3, k4, k5, k6 = jax.random.split(key, 6)
        x_qk = jax.random.normal(k1, (B, T, C), jnp.float32)
        xt_v = jax.random.normal(k2, (B, T, C), jnp.float32)
        # c_attn: Linear(C, 2C) with bias -- weight stored transposed as (C, 2C).
        w_attn = jax.random.normal(k3, (C, 2 * C), jnp.float32) * 0.02
        b_attn = jax.random.normal(k4, (2 * C,), jnp.float32) * 0.02
        v_tmp = jax.random.normal(k5, (H, H), jnp.float32) * 0.02
        proj_tmp = jax.random.normal(k6, (H, H), jnp.float32) * 0.02
        return x_qk, xt_v, w_attn, b_attn, v_tmp, proj_tmp

    # (use_v, use_proj, T, tm_tile, tq_tile): the T=32 configs force multiple
    # token tiles to exercise the triangular-grid / multi-block path.
    configs = [
        (False, False, 8, None, None),
        (True,  True,  8, None, None),
        (False, True,  32, 16, 8),
        (True,  False, 32, 16, 8),
    ]

    ok = True
    for use_v, use_proj, T, tm_t, tq_t in configs:
        x_qk, xt_v, w_attn, b_attn, v_tmp, proj_tmp = make_inputs(T)
        y = factored_attention_alibi(
            x_qk, xt_v, w_attn, b_attn, v_tmp, proj_tmp,
            n_head=H, use_v=use_v, use_proj=use_proj,
            tm_tile=tm_t, tq_tile=tq_t)
        y = jax.block_until_ready(y)
        y_ref = reference(x_qk, xt_v, w_attn, b_attn, v_tmp, proj_tmp,
                          n_head=H, use_v=use_v, use_proj=use_proj)
        if not bool(jnp.allclose(y, y_ref, rtol=1e-2, atol=1e-2)):
            ok = False
            print("mismatch", use_v, use_proj, T,
                  float(jnp.max(jnp.abs(y - y_ref))))

    if ok:
        print("KERNEL_OK")
</pallas_src>

<mosaic_0001>
module attributes {stable_mosaic.version = 11 : i64} {
  func.func @_qkv_proj_kernel(%arg0: i32, %arg1: i32, %arg2: memref<4x4xf32, #tpu.memory_space<smem>>, %arg3: memref<1x8x32xf32, #tpu.memory_space<vmem>>, %arg4: memref<32x64xf32, #tpu.memory_space<vmem>>, %arg5: memref<1x64xf32, #tpu.memory_space<vmem>>, %arg6: memref<1x4x8x8xf32, #tpu.memory_space<vmem>>, %arg7: memref<1x4x8x8xf32, #tpu.memory_space<vmem>>) attributes {dimension_semantics = [#tpu.dimension_semantics<parallel>, #tpu.dimension_semantics<parallel>], iteration_bounds = array<i64: 2, 1>, scalar_prefetch = 1 : i64, scratch_operands = 0 : i64, tpu.core_type = #tpu.core_type<tc>, window_params = [{transform_indices = @transform_0, window_bounds = array<i64: 1, 8, 32>}, {pipeline_mode = #tpu.pipeline_mode<synchronous>, transform_indices = @transform_1, window_bounds = array<i64: 32, 64>}, {pipeline_mode = #tpu.pipeline_mode<synchronous>, transform_indices = @transform_2, window_bounds = array<i64: 1, 64>}, {transform_indices = @transform_3, window_bounds = array<i64: 1, 4, 8, 8>}, {transform_indices = @transform_4, window_bounds = array<i64: 1, 4, 8, 8>}]} {
    %c0 = arith.constant 0 : index
    %c0_0 = arith.constant 0 : index
    %c0_1 = arith.constant 0 : index
    %0 = vector.load %arg3[%c0, %c0_0, %c0_1] : memref<1x8x32xf32, #tpu.memory_space<vmem>>, vector<1x8x32xf32>
    %1 = vector.shape_cast %0 : vector<1x8x32xf32> to vector<8x32xf32>
    %c0_2 = arith.constant 0 : index
    %c0_3 = arith.constant 0 : index
    %2 = vector.load %arg5[%c0_2, %c0_3] : memref<1x64xf32, #tpu.memory_space<vmem>>, vector<1x64xf32>
    %c0_4 = arith.constant 0 : index
    %c0_5 = arith.constant 0 : index
    %3 = vector.load %arg4[%c0_4, %c0_5] : memref<32x64xf32, #tpu.memory_space<vmem>>, vector<32x32xf32>
    %cst = arith.constant dense<0.000000e+00> : vector<8x32xf32>
    %4 = tpu.matmul %1, %3, %cst {dimension_numbers = #tpu.dot_dimension_numbers<[1], [0], [0], [1], [0, 0, 1, 1], [], []>} : vector<8x32xf32>, vector<32x32xf32>, vector<8x32xf32> -> vector<8x32xf32>
    %5 = vector.extract_strided_slice %2 {offsets = [0, 0], sizes = [1, 32], strides = [1, 1]} : vector<1x64xf32> to vector<1x32xf32>
    %6 = vector.broadcast %5 : vector<1x32xf32> to vector<8x32xf32>
    %7 = arith.addf %4, %6 : vector<8x32xf32>
    %8 = vector.extract_strided_slice %7 {offsets = [0, 0], sizes = [8, 8], strides = [1, 1]} : vector<8x32xf32> to vector<8x8xf32>
    %9 = vector.extract_strided_slice %7 {offsets = [0, 8], sizes = [8, 8], strides = [1, 1]} : vector<8x32xf32> to vector<8x8xf32>
    %10 = vector.extract_strided_slice %7 {offsets = [0, 16], sizes = [8, 8], strides = [1, 1]} : vector<8x32xf32> to vector<8x8xf32>
    %11 = vector.extract_strided_slice %7 {offsets = [0, 24], sizes = [8, 8], strides = [1, 1]} : vector<8x32xf32> to vector<8x8xf32>
    %12 = vector.shape_cast %8 : vector<8x8xf32> to vector<1x8x8xf32>
    %13 = vector.shape_cast %9 : vector<8x8xf32> to vector<1x8x8xf32>
    %14 = vector.shape_cast %10 : vector<8x8xf32> to vector<1x8x8xf32>
    %15 = vector.shape_cast %11 : vector<8x8xf32> to vector<1x8x8xf32>
    %16 = tpu.concatenate %12, %13, %14, %15 in 0 : vector<1x8x8xf32>, vector<1x8x8xf32>, vector<1x8x8xf32>, vector<1x8x8xf32> -> vector<4x8x8xf32>
    %c0_6 = arith.constant 0 : index
    %c0_7 = arith.constant 0 : index
    %c0_8 = arith.constant 0 : index
    %c0_9 = arith.constant 0 : index
    %17 = vector.load %arg6[%c0_6, %c0_7, %c0_8, %c0_9] : memref<1x4x8x8xf32, #tpu.memory_space<vmem>>, vector<1x4x8x8xf32>
    %18 = vector.shape_cast %17 : vector<1x4x8x8xf32> to vector<4x8x8xf32>
    %19 = vector.shape_cast %16 : vector<4x8x8xf32> to vector<1x4x8x8xf32>
    tpu.vector_store %arg6[%c0_6, %c0_7, %c0_8, %c0_9], %19 {strides = array<i32>} : memref<1x4x8x8xf32, #tpu.memory_space<vmem>>, vector<1x4x8x8xf32>,
    %c0_10 = arith.constant 0 : index
    %c32 = arith.constant 32 : index
    %20 = vector.load %arg4[%c0_10, %c32] : memref<32x64xf32, #tpu.memory_space<vmem>>, vector<32x32xf32>
    %cst_11 = arith.constant dense<0.000000e+00> : vector<8x32xf32>
    %21 = tpu.matmul %1, %20, %cst_11 {dimension_numbers = #tpu.dot_dimension_numbers<[1], [0], [0], [1], [0, 0, 1, 1], [], []>} : vector<8x32xf32>, vector<32x32xf32>, vector<8x32xf32> -> vector<8x32xf32>
    %22 = vector.extract_strided_slice %2 {offsets = [0, 32], sizes = [1, 32], strides = [1, 1]} : vector<1x64xf32> to vector<1x32xf32>
    %23 = vector.broadcast %22 : vector<1x32xf32> to vector<8x32xf32>
    %24 = arith.addf %21, %23 : vector<8x32xf32>
    %25 = vector.extract_strided_slice %24 {offsets = [0, 0], sizes = [8, 8], strides = [1, 1]} : vector<8x32xf32> to vector<8x8xf32>
    %26 = vector.extract_strided_slice %24 {offsets = [0, 8], sizes = [8, 8], strides = [1, 1]} : vector<8x32xf32> to vector<8x8xf32>
    %27 = vector.extract_strided_slice %24 {offsets = [0, 16], sizes = [8, 8], strides = [1, 1]} : vector<8x32xf32> to vector<8x8xf32>
    %28 = vector.extract_strided_slice %24 {offsets = [0, 24], sizes = [8, 8], strides = [1, 1]} : vector<8x32xf32> to vector<8x8xf32>
    %29 = vector.shape_cast %25 : vector<8x8xf32> to vector<1x8x8xf32>
    %30 = vector.shape_cast %26 : vector<8x8xf32> to vector<1x8x8xf32>
    %31 = vector.shape_cast %27 : vector<8x8xf32> to vector<1x8x8xf32>
    %32 = vector.shape_cast %28 : vector<8x8xf32> to vector<1x8x8xf32>
    %33 = tpu.concatenate %29, %30, %31, %32 in 0 : vector<1x8x8xf32>, vector<1x8x8xf32>, vector<1x8x8xf32>, vector<1x8x8xf32> -> vector<4x8x8xf32>
    %c0_12 = arith.constant 0 : index
    %c0_13 = arith.constant 0 : index
    %c0_14 = arith.constant 0 : index
    %c0_15 = arith.constant 0 : index
    %34 = vector.load %arg7[%c0_12, %c0_13, %c0_14, %c0_15] : memref<1x4x8x8xf32, #tpu.memory_space<vmem>>, vector<1x4x8x8xf32>
    %35 = vector.shape_cast %34 : vector<1x4x8x8xf32> to vector<4x8x8xf32>
    %36 = vector.shape_cast %33 : vector<4x8x8xf32> to vector<1x4x8x8xf32>
    tpu.vector_store %arg7[%c0_12, %c0_13, %c0_14, %c0_15], %36 {strides = array<i32>} : memref<1x4x8x8xf32, #tpu.memory_space<vmem>>, vector<1x4x8x8xf32>,
    return
  }
  func.func @transform_0(%arg0: i32, %arg1: i32, %arg2: memref<4x4xf32, #tpu.memory_space<smem>>) -> (i32, i32, i32) {
    %c0_i32 = arith.constant 0 : i32
    %c0_i32_0 = arith.constant 0 : i32
    return %arg0, %arg1, %c0_i32 : i32, i32, i32
  }
  func.func @transform_1(%arg0: i32, %arg1: i32, %arg2: memref<4x4xf32, #tpu.memory_space<smem>>) -> (i32, i32) {
    %c0_i32 = arith.constant 0 : i32
    %c0_i32_0 = arith.constant 0 : i32
    %c0_i32_1 = arith.constant 0 : i32
    return %c0_i32, %c0_i32_0 : i32, i32
  }
  func.func @transform_2(%arg0: i32, %arg1: i32, %arg2: memref<4x4xf32, #tpu.memory_space<smem>>) -> (i32, i32) {
    %c0_i32 = arith.constant 0 : i32
    %c0_i32_0 = arith.constant 0 : i32
    %c0_i32_1 = arith.constant 0 : i32
    return %c0_i32, %c0_i32_0 : i32, i32
  }
  func.func @transform_3(%arg0: i32, %arg1: i32, %arg2: memref<4x4xf32, #tpu.memory_space<smem>>) -> (i32, i32, i32, i32) {
    %c0_i32 = arith.constant 0 : i32
    %c0_i32_0 = arith.constant 0 : i32
    %c0_i32_1 = arith.constant 0 : i32
    return %arg0, %c0_i32, %arg1, %c0_i32_0 : i32, i32, i32, i32
  }
  func.func @transform_4(%arg0: i32, %arg1: i32, %arg2: memref<4x4xf32, #tpu.memory_space<smem>>) -> (i32, i32, i32, i32) {
    %c0_i32 = arith.constant 0 : i32
    %c0_i32_0 = arith.constant 0 : i32
    %c0_i32_1 = arith.constant 0 : i32
    return %arg0, %c0_i32, %arg1, %c0_i32_0 : i32, i32, i32, i32
  }
}

</mosaic_0001>

<llo_original>
// kernel: tpu_custom_call.1
$region0: #{tpu_custom_call.1}
  #allocation0 [shape = 'u32[]', space=smem, size = 0x4, offset = 0x4, fixed_abs, tag = 'smem constant byte address 0x4 - core index']
  #allocation1 [shape = 'u32[72,128]{1,0:T(1,128)}', space=vmem, size = 0x9000, scoped, tag = 'internal scratch']
  #allocation2 [shape = 's32[1]{0}', space=sflag, size = 0x4, scoped, tag = 'scoped memory for tpu_custom_call.1']
  #allocation3 [shape = 'u8[2048]{0}', space=smem, size = 0x800, scoped, tag = 'prefetched SMEM operand 0']
  %s0 = inlined_call_operand.hbm [shape: f32[4,4], index: 0, kind: input, shape index: {}]
  %s1 = inlined_call_operand.hbm [shape: f32[2,8,32], index: 1, kind: input, shape index: {}]
  %s2 = inlined_call_operand.hbm [shape: f32[32,64], index: 2, kind: input, shape index: {}]
  %s3 = inlined_call_operand.vmem [shape: f32[1,64], index: 3, kind: input, shape index: {}]
  %s4 = inlined_call_operand.hbm [shape: f32[2,4,8,8], index: 4, kind: output, shape index: {0}]
  %s5 = inlined_call_operand.hbm [shape: f32[2,4,8,8], index: 5, kind: output, shape index: {1}]
  %6 = xla_tuple %s4, %s5
  %s7 = sld [smem:[#allocation0]]
  $region61: #{tpu_custom_call.1} parent=0
    _
  %s9 = ssub.s32 1, %s7
  %s10 = scalar_select 0, %s9, %s7
  %s12 = sshll.u32 %s0, 4
  %s13 = int_to_ptr.hbm [resolvable:$true] %s12
  %15 = dma.hbm_to_smem %s13, 64, [#allocation3], [#allocation2]
  %17 = dma.done [#allocation2], 64
  %18 = sfence
  $region1: #{tpu_custom_call.1} parent=0
    #allocation4 [shape = 'u8[8192]{0}', space=vmem, size = 0x2000, scoped, tag = 'input window, operand 1']
    #allocation5 [shape = 's32[2]{0}', space=sflag, size = 0x8, scoped, tag = 'scoped memory for tpu_custom_call.1']
    #allocation6 [shape = 's32[2]{0}', space=sflag, size = 0x8, scoped, tag = 'scoped memory for tpu_custom_call.1']
    #allocation7 [shape = 'u8[16384]{0}', space=vmem, size = 0x4000, scoped, tag = 'input window, operand 2, single buffered']
    #allocation8 [shape = 's32[1]{0}', space=sflag, size = 0x4, scoped, tag = 'scoped memory for tpu_custom_call.1']
    #allocation9 [shape = 'u8[32768]{0}', space=vmem, size = 0x8000, scoped, tag = 'output window, operand 0']
    #allocation10 [shape = 'u8[32768]{0}', space=vmem, size = 0x8000, scoped, tag = 'output window, operand 1']
    #allocation11 [shape = 's32[2]{0}', space=sflag, size = 0x8, scoped, tag = 'scoped memory for tpu_custom_call.1']
    %19 = vsyncpa [#allocation5], 0
    %s20 = scalar_lea.sflag [#allocation5], 1
    %21 = vsyncpa %s20, 0
    %22 = vsyncpa [#allocation8], 0
    %23 = vsyncpa [#allocation6], 0
    %s24 = scalar_lea.sflag [#allocation6], 1
    %25 = vsyncpa %s24, 0
    %26 = vsyncpa [#allocation11], 0
    %s27 = scalar_lea.sflag [#allocation11], 1
    %28 = vsyncpa %s27, 0
    loop: start=0, step=1, limit=4
    $region2: #{tpu_custom_call.1} parent=1 // loop_pre_header
      _
    $region3: #{tpu_custom_call.1} parent=1 // loop_header
      %s30 = sphi 0, %s34
      %p31 = scmp.ge.s32.totalorder %s30, 4
      %s37 = sphi 0, %s49
      %s38 = sphi 0, %s45
      %s39 = sphi 0, %s37
      %s40 = sphi 0, %s38
      %s41 = sphi 0, %s39
      %s42 = sphi 0, %s40
      %s54 = sphi 0, %s56
      %s57 = sphi 0, %s54
      %s58 = sphi 0, %s57
      %s74 = sphi 0, %s58
      %s78 = sphi 0, %s78
      %s80 = sphi 0, %s78
      %s81 = sphi 0, %s80
      %s95 = sphi 0, %s81
      %s99 = sphi 0, %s99
      %s101 = sphi 0, %s99
      %s102 = sphi 0, %s101
      %s116 = sphi 0, %s102
      %s124 = sphi 0, %s126
      %s127 = sphi 0, %s124
      %s128 = sphi 0, %s127
      %s144 = sphi 0, %s128
      %s152 = sphi 0, %s154
      %s155 = sphi 0, %s152
      %s156 = sphi 0, %s155
      %s172 = sphi 0, %s156
    $region4: #{tpu_custom_call.1} parent=1 // loop_header_branch
      %33 = sbr.rel (%p31) target = $region8
    $region5: #{tpu_custom_call.1} parent=1 // loop_body
      %s35 = ssub.s32 %s30, 1
      %s36 = ssub.s32 %s30, 2
      %s43 = sadd.s32 1, %s38
      %p44 = scmp.ge.s32.totalorder %s43, 1
      %s45 = scalar_select %p44, 0, %s43
      %s46 = sadd.s32 1, %s37
      %s47 = scalar_select %p44, %s46, %s37
      %p48 = scmp.ge.s32.totalorder %s47, 2
      %s49 = scalar_select %p48, 0, %s47
      %s50 = ssub.s32 %s37, %s49
      %s51 = ssub.s32 %s38, %s45
      %s52 = sor.u32 %s50, %s51
      %p53 = scmp.eq.s32.totalorder %s52, 0
      %s55 = sadd.s32 %s54, 1
      %s56 = scalar_select %p53, %s54, %s55
      %p59 = pneg %p53
      %p60 = scmp.eq.s32.totalorder %s30, 1
      %p61 = por %p59, %p60
      %p62 = scmp.ne.s32.totalorder %s54, %s57
      %p63 = scmp.eq.s32.totalorder %s30, 0
      %p64 = por %p62, %p63
      %p65 = scmp.ne.s32.totalorder %s54, %s57
      %p66 = scmp.eq.s32.totalorder %s35, 1
      %p67 = por %p65, %p66
      %p68 = scmp.ne.s32.totalorder %s57, %s58
      %p69 = scmp.eq.s32.totalorder %s35, 0
      %p70 = por %p68, %p69
      %p71 = scmp.ne.s32.totalorder %s57, %s58
      %p72 = scmp.eq.s32.totalorder %s36, 1
      %p73 = por %p71, %p72
      %p75 = scmp.ne.s32.totalorder %s58, %s74
      %p76 = scmp.eq.s32.totalorder %s36, 0
      %p77 = por %p75, %p76
      %s79 = sadd.s32 %s78, 1
      %p82 = scmp.eq.s32.totalorder %s30, 1
      %p83 = scmp.ne.s32.totalorder %s78, %s80
      %p84 = scmp.eq.s32.totalorder %s30, 0
      %p85 = por %p83, %p84
      %p86 = scmp.ne.s32.totalorder %s78, %s80
      %p87 = scmp.eq.s32.totalorder %s35, 1
      %p88 = por %p86, %p87
      %p89 = scmp.ne.s32.totalorder %s80, %s81
      %p90 = scmp.eq.s32.totalorder %s35, 0
      %p91 = por %p89, %p90
      %p92 = scmp.ne.s32.totalorder %s80, %s81
      %p93 = scmp.eq.s32.totalorder %s36, 1
      %p94 = por %p92, %p93
      %p96 = scmp.ne.s32.totalorder %s81, %s95
      %p97 = scmp.eq.s32.totalorder %s36, 0
      %p98 = por %p96, %p97
      %s100 = sadd.s32 %s99, 1
      %p103 = scmp.eq.s32.totalorder %s30, 1
      %p104 = scmp.ne.s32.totalorder %s99, %s101
      %p105 = scmp.eq.s32.totalorder %s30, 0
      %p106 = por %p104, %p105
      %p107 = scmp.ne.s32.totalorder %s99, %s101
      %p108 = scmp.eq.s32.totalorder %s35, 1
      %p109 = por %p107, %p108
      %p110 = scmp.ne.s32.totalorder %s101, %s102
      %p111 = scmp.eq.s32.totalorder %s35, 0
      %p112 = por %p110, %p111
      %p113 = scmp.ne.s32.totalorder %s101, %s102
      %p114 = scmp.eq.s32.totalorder %s36, 1
      %p115 = por %p113, %p114
      %p117 = scmp.ne.s32.totalorder %s102, %s116
      %p118 = scmp.eq.s32.totalorder %s36, 0
      %p119 = por %p117, %p118
      %s120 = ssub.s32 %s37, %s49
      %s121 = ssub.s32 %s38, %s45
      %s122 = sor.u32 %s120, %s121
      %p123 = scmp.eq.s32.totalorder %s122, 0
      %s125 = sadd.s32 %s124, 1
      %s126 = scalar_select %p123, %s124, %s125
      %p129 = pneg %p123
      %p130 = scmp.eq.s32.totalorder %s30, 1
      %p131 = por %p129, %p130
      %p132 = scmp.ne.s32.totalorder %s124, %s127
      %p133 = scmp.eq.s32.totalorder %s30, 0
      %p134 = por %p132, %p133
      %p135 = scmp.ne.s32.totalorder %s124, %s127
      %p136 = scmp.eq.s32.totalorder %s35, 1
      %p137 = por %p135, %p136
      %p138 = scmp.ne.s32.totalorder %s127, %s128
      %p139 = scmp.eq.s32.totalorder %s35, 0
      %p140 = por %p138, %p139
      %p141 = scmp.ne.s32.totalorder %s127, %s128
      %p142 = scmp.eq.s32.totalorder %s36, 1
      %p143 = por %p141, %p142
      %p145 = scmp.ne.s32.totalorder %s128, %s144
      %p146 = scmp.eq.s32.totalorder %s36, 0
      %p147 = por %p145, %p146
      %s148 = ssub.s32 %s37, %s49
      %s149 = ssub.s32 %s38, %s45
      %s150 = sor.u32 %s148, %s149
      %p151 = scmp.eq.s32.totalorder %s150, 0
      %s153 = sadd.s32 %s152, 1
      %s154 = scalar_select %p151, %s152, %s153
      %p157 = pneg %p151
      %p158 = scmp.eq.s32.totalorder %s30, 1
      %p159 = por %p157, %p158
      %p160 = scmp.ne.s32.totalorder %s152, %s155
      %p161 = scmp.eq.s32.totalorder %s30, 0
      %p162 = por %p160, %p161
      %p163 = scmp.ne.s32.totalorder %s152, %s155
      %p164 = scmp.eq.s32.totalorder %s35, 1
      %p165 = por %p163, %p164
      %p166 = scmp.ne.s32.totalorder %s155, %s156
      %p167 = scmp.eq.s32.totalorder %s35, 0
      %p168 = por %p166, %p167
      %p169 = scmp.ne.s32.totalorder %s155, %s156
      %p170 = scmp.eq.s32.totalorder %s36, 1
      %p171 = por %p169, %p170
      %p173 = scmp.ne.s32.totalorder %s156, %s172
      %p174 = scmp.eq.s32.totalorder %s36, 0
      %p175 = por %p173, %p174
      %p176 = scmp.le.s32.totalorder 1, %s30
      %p177 = scmp.lt.s32.totalorder %s30, 3
      %p178 = pnand %p176, %p177
      %p179 = pneg %p178
      // Predicated region
      $region9: #{tpu_custom_call.1} parent=5 // pred_check
        _
      $region10: #{tpu_custom_call.1} parent=5 // pred_check_branch
        %181 = sbr.rel (%p178) target = $region12
      $region11: #{tpu_custom_call.1} parent=5 // pred_region
        %s182 = ssub.s32 %s30, 1
        // Predicated region
        $region13: #{tpu_custom_call.1} parent=11 // pred_check
          %p183 = pneg %p91
        $region14: #{tpu_custom_call.1} parent=11 // pred_check_branch
          %185 = sbr.rel (%p183) target = $region16
        $region15: #{tpu_custom_call.1} parent=11 // pred_region
          %187 = vsyncadd [#allocation8], 0
          %s188 = sshll.u32 %s2, 4
          %s189 = int_to_ptr.hbm [resolvable:$true] %s188
          %s190 = sshll.u32 [#allocation7], 4
          %s191 = int_to_ptr.vmem [resolvable:$true] %s190
          %196 = dma.hbm_to_vmem [thread:$0]  %s189, 512, %s191, [#allocation8], 128, 128, 8
        $region16: #{tpu_custom_call.1} parent=11 // pred_fallthru
          _
        // Predicated region
        $region17: #{tpu_custom_call.1} parent=11 // pred_check
          %p197 = pneg %p112
        $region18: #{tpu_custom_call.1} parent=11 // pred_check_branch
          %199 = sbr.rel (%p197) target = $region20
        $region19: #{tpu_custom_call.1} parent=11 // pred_region
          _
        $region20: #{tpu_custom_call.1} parent=11 // pred_fallthru
          _
      $region12: #{tpu_custom_call.1} parent=5 // pred_fallthru
        _
      %p200 = scmp.lt.s32.totalorder %s30, 2
      // Predicated region
      $region21: #{tpu_custom_call.1} parent=5 // pred_check
        %p201 = pneg %p200
      $region22: #{tpu_custom_call.1} parent=5 // pred_check_branch
        %203 = sbr.rel (%p201) target = $region24
      $region23: #{tpu_custom_call.1} parent=5 // pred_region
        // Predicated region
        $region25: #{tpu_custom_call.1} parent=23 // pred_check
          %p204 = pneg %p64
        $region26: #{tpu_custom_call.1} parent=23 // pred_check_branch
          %206 = sbr.rel (%p204) target = $region28
        $region27: #{tpu_custom_call.1} parent=23 // pred_region
          %s207 = sand.u32 %s54, 1
          %s208 = scalar_lea.sflag [#allocation5], %s207
          %s209 = sand.u32 %s54, 1
          %s210 = smul.addr %s209, 8
          %s211 = scalar_lea.vmem [#allocation4], %s210
          %213 = vsyncadd %s208, 0
          %s214 = sadd.s32 %s38, %s37
          %s215 = smul.addr %s214, 8
          %s216 = scalar_lea.hbm %s1, %s215
          %s218 = sshll.u32 %s216, 4
          %s219 = int_to_ptr.hbm [resolvable:$true] %s218
          %s220 = sshll.u32 %s211, 4
          %s221 = int_to_ptr.vmem [resolvable:$true] %s220
          %223 = dma.hbm_to_vmem [thread:$0]  %s219, 128, %s221, %s208
        $region28: #{tpu_custom_call.1} parent=23 // pred_fallthru
          _
      $region24: #{tpu_custom_call.1} parent=5 // pred_fallthru
        _
      %p224 = scmp.le.s32.totalorder 1, %s30
      %p225 = scmp.lt.s32.totalorder %s30, 3
      %p226 = pnand %p224, %p225
      %p227 = pneg %p226
      // Predicated region
      $region29: #{tpu_custom_call.1} parent=5 // pred_check
        _
      $region30: #{tpu_custom_call.1} parent=5 // pred_check_branch
        %229 = sbr.rel (%p226) target = $region32
      $region31: #{tpu_custom_call.1} parent=5 // pred_region
        %s230 = ssub.s32 %s30, 1
        %s231 = sand.u32 %s57, 1
        %s232 = scalar_lea.sflag [#allocation5], %s231
        %s233 = sand.u32 %s57, 1
        %s234 = smul.addr %s233, 8
        %s235 = scalar_lea.vmem [#allocation4], %s234
        // Predicated region
        $region33: #{tpu_custom_call.1} parent=31 // pred_check
          %p236 = pneg %p70
        $region34: #{tpu_custom_call.1} parent=31 // pred_check_branch
          %238 = sbr.rel (%p236) target = $region36
        $region35: #{tpu_custom_call.1} parent=31 // pred_region
          %240 = dma.done %s232, 128
        $region36: #{tpu_custom_call.1} parent=31 // pred_fallthru
          _
        // Predicated region
        $region37: #{tpu_custom_call.1} parent=31 // pred_check
          %p241 = pneg %p91
        $region38: #{tpu_custom_call.1} parent=31 // pred_check_branch
          %243 = sbr.rel (%p241) target = $region40
        $region39: #{tpu_custom_call.1} parent=31 // pred_region
          %245 = dma.done [#allocation8], 512
        $region40: #{tpu_custom_call.1} parent=31 // pred_fallthru
          _
        %s246 = sand.u32 %s57, 1
        %s247 = scalar_lea.sflag [#allocation5], %s246
        %s248 = sand.u32 %s57, 1
        %s249 = smul.addr %s248, 8
        %s250 = scalar_lea.vmem [#allocation4], %s249
        %p251 = pneg %p70
        %p252 = pneg %p67
        %p253 = pneg %p91
        %p254 = pneg %p88
        %p255 = pneg %p112
        %p256 = pneg %p109
        %p257 = pneg %p140
        %p258 = pneg %p137
        %s259 = sand.u32 %s127, 1
        %s260 = scalar_lea.sflag [#allocation6], %s259
        %s261 = sand.u32 %s127, 1
        %s262 = smul.addr %s261, 32
        %s263 = scalar_lea.vmem [#allocation9], %s262
        %p264 = pneg %p168
        %p265 = pneg %p165
        %s266 = sand.u32 %s155, 1
        %s267 = scalar_lea.sflag [#allocation11], %s266
        %s268 = sand.u32 %s155, 1
        %s269 = smul.addr %s268, 32
        %s270 = scalar_lea.vmem [#allocation10], %s269
        %v271 = vld [vmem:[%s235] sm:$0xff]
        %v272 = vld [vmem:[%s3] sm:$0x1]
        %v273 = vld [vmem:[#allocation7] sm:$0xff]
        %v274 = vld [vmem:[#allocation7 + $0x8] sm:$0xff]
        %v275 = vld [vmem:[#allocation7 + $0x10] sm:$0xff]
        %v276 = vld [vmem:[#allocation7 + $0x18] sm:$0xff]
        %v278 = vperm.slane %v272, 0
        %vm280 = vcmask 261120
        %v282 = vsel %vm280, %v271, 0
        %284 = vmatpush.msra.mxu0 0.0
        %285 = vmatpush.msra.mxu0 0.0
        %286 = vmatpush.msra.mxu0 0.0
        %287 = vmatpush.msra.mxu0 0.0
        %288 = vmatpush.msra.mxu0 0.0
        %289 = vmatpush.msra.mxu0 0.0
        %290 = vmatpush.msra.mxu0 0.0
        %291 = vmatpush.msra.mxu0 0.0
        %292 = vmatpush.msra.mxu0 0.0
        %293 = vmatpush.msra.mxu0 0.0
        %294 = vmatpush.msra.mxu0 0.0
        %295 = vmatpush.msra.mxu0 0.0
        %296 = vmatpush.msra.mxu0 %v276
        %297 = vmatpush.msra.mxu0 %v275
        %298 = vmatpush.msra.mxu0 %v274
        %299 = vmatpush.msra.mxu0 %v273
        %300 = vmatmul.f32.gmra.mxu0 %v282
        %v301 = vpop.f32.mrf.mxu0
        %v302 = vadd.f32 %v278, %v301
        %303 = vdwg.mxu0
        %305 = vrot.lane.b32.xlu0 %v302, 120
        %v306 = vpop.permute.xlu0 %305
        %308 = vrot.lane.b32.xlu0 %v302, 112
        %v309 = vpop.permute.xlu0 %308
        %311 = vrot.lane.b32.xlu0 %v302, 104
        %v312 = vpop.permute.xlu0 %311
        %vm314 = vcmask 64512
        %315 = vst.msk [vmem:[%s263] sm:$0xff] %vm314, %v302
        %316 = vst.msk [vmem:[%s263 + $0x8] sm:$0xff] %vm314, %v306
        %317 = vst.msk [vmem:[%s263 + $0x10] sm:$0xff] %vm314, %v309
        %318 = vst.msk [vmem:[%s263 + $0x18] sm:$0xff] %vm314, %v312
        %v319 = vld [vmem:[#allocation7] sm:$0xff]
        %v320 = vld [vmem:[#allocation7 + $0x8] sm:$0xff]
        %v321 = vld [vmem:[#allocation7 + $0x10] sm:$0xff]
        %v322 = vld [vmem:[#allocation7 + $0x18] sm:$0xff]
        %327 = vrot.lane.b32.xlu0 %v319, 96
        %v328 = vpop.permute.xlu0 %327
        %329 = vrot.lane.b32.xlu0 %v320, 96
        %v330 = vpop.permute.xlu0 %329
        %331 = vrot.lane.b32.xlu0 %v321, 96
        %v332 = vpop.permute.xlu0 %331
        %333 = vrot.lane.b32.xlu0 %v322, 96
        %v334 = vpop.permute.xlu0 %333
        %339 = vrot.lane.b32.xlu0 %v278, 96
        %v340 = vpop.permute.xlu0 %339
        %342 = vmatpush.msra.mxu0 0.0
        %343 = vmatpush.msra.mxu0 0.0
        %344 = vmatpush.msra.mxu0 0.0
        %345 = vmatpush.msra.mxu0 0.0
        %346 = vmatpush.msra.mxu0 0.0
        %347 = vmatpush.msra.mxu0 0.0
        %348 = vmatpush.msra.mxu0 0.0
        %349 = vmatpush.msra.mxu0 0.0
        %350 = vmatpush.msra.mxu0 0.0
        %351 = vmatpush.msra.mxu0 0.0
        %352 = vmatpush.msra.mxu0 0.0
        %353 = vmatpush.msra.mxu0 0.0
        %354 = vmatpush.msra.mxu0 %v334
        %355 = vmatpush.msra.mxu0 %v332
        %356 = vmatpush.msra.mxu0 %v330
        %357 = vmatpush.msra.mxu0 %v328
        %358 = vmatmul.f32.gmra.mxu0 %v282
        %v359 = vpop.f32.mrf.mxu0
        %v360 = vadd.f32 %v340, %v359
        %361 = vdwg.mxu0
        %363 = vrot.lane.b32.xlu0 %v360, 120
        %v364 = vpop.permute.xlu0 %363
        %366 = vrot.lane.b32.xlu0 %v360, 112
        %v367 = vpop.permute.xlu0 %366
        %369 = vrot.lane.b32.xlu0 %v360, 104
        %v370 = vpop.permute.xlu0 %369
        %372 = vst.msk [vmem:[%s270] sm:$0xff] %vm314, %v360
        %373 = vst.msk [vmem:[%s270 + $0x8] sm:$0xff] %vm314, %v364
        %374 = vst.msk [vmem:[%s270 + $0x10] sm:$0xff] %vm314, %v367
        %375 = vst.msk [vmem:[%s270 + $0x18] sm:$0xff] %vm314, %v370
        %s376 = sand.u32 %s127, 1
        %s377 = scalar_lea.sflag [#allocation6], %s376
        %s378 = sand.u32 %s127, 1
        %s379 = smul.addr %s378, 32
        %s380 = scalar_lea.vmem [#allocation9], %s379
        %s381 = sand.u32 %s155, 1
        %s382 = scalar_lea.sflag [#allocation11], %s381
        %s383 = sand.u32 %s155, 1
        %s384 = smul.addr %s383, 32
        %s385 = scalar_lea.vmem [#allocation10], %s384
        // Predicated region
        $region41: #{tpu_custom_call.1} parent=31 // pred_check
          %p386 = pneg %p137
        $region42: #{tpu_custom_call.1} parent=31 // pred_check_branch
          %388 = sbr.rel (%p386) target = $region44
        $region43: #{tpu_custom_call.1} parent=31 // pred_region
          %390 = vsyncadd %s377, 0
          %s391 = smul.addr %s39, 4
          %s392 = sadd.s32 %s40, %s391
          %s393 = smul.addr %s392, 8
          %s394 = scalar_lea.hbm %s4, %s393
          %s395 = sshll.u32 %s380, 4
          %s396 = int_to_ptr.vmem [resolvable:$true] %s395
          %s397 = sshll.u32 %s394, 4
          %s398 = int_to_ptr.hbm [resolvable:$true] %s397
          %403 = dma.vmem_to_hbm [thread:$0]  %s396, 512, %s398, %s377, 128, 128, 8
        $region44: #{tpu_custom_call.1} parent=31 // pred_fallthru
          _
        // Predicated region
        $region45: #{tpu_custom_call.1} parent=31 // pred_check
          %p404 = pneg %p165
        $region46: #{tpu_custom_call.1} parent=31 // pred_check_branch
          %406 = sbr.rel (%p404) target = $region48
        $region47: #{tpu_custom_call.1} parent=31 // pred_region
          %408 = vsyncadd %s382, 0
          %s409 = smul.addr %s39, 4
          %s410 = sadd.s32 %s40, %s409
          %s411 = smul.addr %s410, 8
          %s412 = scalar_lea.hbm %s5, %s411
          %s413 = sshll.u32 %s385, 4
          %s414 = int_to_ptr.vmem [resolvable:$true] %s413
          %s415 = sshll.u32 %s412, 4
          %s416 = int_to_ptr.hbm [resolvable:$true] %s415
          %421 = dma.vmem_to_hbm [thread:$0]  %s414, 512, %s416, %s382, 128, 128, 8
        $region48: #{tpu_custom_call.1} parent=31 // pred_fallthru
          _
      $region32: #{tpu_custom_call.1} parent=5 // pred_fallthru
        _
      %p422 = scmp.le.s32.totalorder 2, %s30
      // Predicated region
      $region49: #{tpu_custom_call.1} parent=5 // pred_check
        %p423 = pneg %p422
      $region50: #{tpu_custom_call.1} parent=5 // pred_check_branch
        %425 = sbr.rel (%p423) target = $region52
      $region51: #{tpu_custom_call.1} parent=5 // pred_region
        %s426 = ssub.s32 %s30, 2
        // Predicated region
        $region53: #{tpu_custom_call.1} parent=51 // pred_check
          %p427 = pneg %p143
        $region54: #{tpu_custom_call.1} parent=51 // pred_check_branch
          %429 = sbr.rel (%p427) target = $region56
        $region55: #{tpu_custom_call.1} parent=51 // pred_region
          %s430 = sand.u32 %s128, 1
          %s431 = scalar_lea.sflag [#allocation6], %s430
          %s432 = sand.u32 %s128, 1
          %s433 = smul.addr %s432, 32
          %s434 = scalar_lea.vmem [#allocation9], %s433
          %436 = dma.done %s431, 512
        $region56: #{tpu_custom_call.1} parent=51 // pred_fallthru
          _
        // Predicated region
        $region57: #{tpu_custom_call.1} parent=51 // pred_check
          %p437 = pneg %p171
        $region58: #{tpu_custom_call.1} parent=51 // pred_check_branch
          %439 = sbr.rel (%p437) target = $region60
        $region59: #{tpu_custom_call.1} parent=51 // pred_region
          %s440 = sand.u32 %s156, 1
          %s441 = scalar_lea.sflag [#allocation11], %s440
          %s442 = sand.u32 %s156, 1
          %s443 = smul.addr %s442, 32
          %s444 = scalar_lea.vmem [#allocation10], %s443
          %446 = dma.done %s441, 512
        $region60: #{tpu_custom_call.1} parent=51 // pred_fallthru
          _
      $region52: #{tpu_custom_call.1} parent=5 // pred_fallthru
        _
    $region6: #{tpu_custom_call.1} parent=1 // loop_footer
      %s34 = sadd.s32 1, %s30
    $region7: #{tpu_custom_call.1} parent=1 // loop_footer_branch
      %29 = sbr.rel target = $region3
    $region8: #{tpu_custom_call.1} parent=1 // loop_exit
      _
    %447 = vsyncpa [#allocation5], 1
    %s448 = scalar_lea.sflag [#allocation5], 1
    %449 = vsyncpa %s448, 1
    %450 = vsyncpa [#allocation8], 1
    %451 = vsyncpa [#allocation6], 1
    %s452 = scalar_lea.sflag [#allocation6], 1
    %453 = vsyncpa %s452, 1
    %454 = vsyncpa [#allocation11], 1
    %s455 = scalar_lea.sflag [#allocation11], 1
    %456 = vsyncpa %s455, 1

</llo_original>
